<compile_context>
chip_gen: v6e
topology: v6e:2x2x1
jax: 0.10.0
libtpu: 0.0.40
codegen_flags: <defaults>
</compile_context>

<pallas_src>
import functools
import numpy as np
import jax
import jax.numpy as jnp
from jax.experimental import pallas as pl
from jax.experimental.pallas import tpu as pltpu

# ----------------------------- model hyperparameters -----------------------------
ATOM_FDIM = 16
BOND_FDIM = 16
HIDDEN = 32
DIM_FEATURES = 8      # extra per-molecule features (use_input_features=True)
DIM_TARGET = 4
DEPTH = 3

# ----------------------------- synthetic-graph sizes -----------------------------
N_MOLS = 2
ATOMS_PER_MOL = 8
MAX_NB = 2

_LANE = 128
_SUBLANE = 8


def _round_up(x, m):
    return (x + m - 1) // m * m


# ----------------------------- Pallas kernel -----------------------------
def mpnn_kernel(f_atoms_ref, f_bonds_ref, mrev_ref, a2b_ref, scope_ref,
                w_i_ref, w_h_ref, w_o_a_ref, w_o_m_ref, b_o_ref,
                feats_ref, w_ffn_h_ref, w_ffn_f_ref, b_ffn_ref,
                out_ref, *, depth):
    f_atoms = f_atoms_ref[...]
    f_bonds = f_bonds_ref[...]
    Mrev = mrev_ref[...]    # bf16, fused (B2A @ A2B - P_rev): agg - rev in one structural matmul
    A2B = a2b_ref[...]      # bf16, atom <- incoming-bond counts (readout only)
    w_h = w_h_ref[...]      # hoisted: loop-invariant, only h*h=32*32 f32 (a few vregs)

    # input = W_i(f_bonds); message = ReLU(input)       (bias=False)
    inp = jnp.dot(f_bonds, w_i_ref[...], preferred_element_type=jnp.float32)
    message = jnp.maximum(inp, 0.0)

    # message passing: depth-1 iterations (directed bond messages)
    # message <- ReLU(inp + (M' @ message) @ W_h),  M' = B2A@A2B - P_rev  (rev subtraction fused)
    for _ in range(depth - 1):
        agg = jnp.dot(Mrev, message.astype(jnp.bfloat16), preferred_element_type=jnp.float32)
        message = jnp.dot(agg, w_h, preferred_element_type=jnp.float32)   # W_h (bias=False)
        message = jnp.maximum(inp + message, 0.0)   # act(input + message); dropout=identity (eval)
        # TODO(synk): on v5e, casting agg/w_h (and the W_o/FFN operands below) to bf16 would avoid
        # multi-pass f32 MXU (~3x); kept f32 here to bound error to the structural path only.

    # readout: per-atom sum of incoming bond messages
    a_message = jnp.dot(A2B, message.astype(jnp.bfloat16), preferred_element_type=jnp.float32)
    # W_o(concat([f_atoms, a_message])) with split weight (avoids in-kernel concat), + bias, ReLU
    atom_hiddens = jnp.maximum(
        jnp.dot(f_atoms, w_o_a_ref[...], preferred_element_type=jnp.float32)
        + jnp.dot(a_message, w_o_m_ref[...], preferred_element_type=jnp.float32)
        + b_o_ref[...], 0.0)

    # per-molecule mean pooling (a_scope) as matmul; SCOPE kept f32 for exact 1/a_size
    mol_vecs = jnp.dot(scope_ref[...], atom_hiddens, preferred_element_type=jnp.float32)

    # mol_vecs = concat([mol_vecs, features_batch]); FFN Linear (split weight); sigmoid (eval)
    logits = (jnp.dot(mol_vecs, w_ffn_h_ref[...], preferred_element_type=jnp.float32)
              + jnp.dot(feats_ref[...], w_ffn_f_ref[...], preferred_element_type=jnp.float32)
              + b_ffn_ref[...])
    out_ref[...] = jax.nn.sigmoid(logits)       # lane-dense (x128) store -> unmasked vst


# ----------------------------- wrapper: padding + pallas_call -----------------------------
def mpnn_forward(f_atoms, f_bonds, M_REV, A2B, SCOPE,
                 w_i, w_h, w_o_a, w_o_m, b_o,
                 feats, w_ffn_h, w_ffn_f, b_ffn,
                 *, depth=DEPTH):
    n_mols, dim_target = SCOPE.shape[0], w_ffn_h.shape[1]
    n_bonds, n_atoms = M_REV.shape[0], A2B.shape[0]
    hidden = w_i.shape[1]
    assert n_bonds % _SUBLANE == 0 and n_atoms % _SUBLANE == 0

    # HIDDEN is intentionally NOT lane-padded (intermediates don't need 128-lane stores);
    # only the final output dim is padded to 128 lanes for an unmasked HBM vst.
    tp = _round_up(dim_target, _LANE)        # lane-padded target
    mp = _round_up(n_mols, _SUBLANE)         # sublane-padded molecule rows

    def pad2(x, rows=None, cols=None):
        r = x.shape[0] if rows is None else rows
        c = x.shape[1] if cols is None else cols
        return jnp.pad(x, ((0, r - x.shape[0]), (0, c - x.shape[1])))

    args = (
        f_atoms, f_bonds,
        # Structural operands as bf16 MXU inputs ({-1,0,1,2} counts exact in bf16);
        # f32 accumulation in-kernel.  bf16 is the right structural dtype on v5e/v6e/v7x alike
        # (an int8 path would additionally require quantizing `message`, and v7x has no int MXU).
        M_REV.astype(jnp.bfloat16), A2B.astype(jnp.bfloat16),
        pad2(SCOPE, rows=mp),                              # mean-pool weights stay f32
        w_i, w_h,
        w_o_a, w_o_m, b_o,
        pad2(feats, rows=mp),
        pad2(w_ffn_h, cols=tp), pad2(w_ffn_f, cols=tp), pad2(b_ffn, cols=tp),
    )

    # advisory cost estimate for XLA scheduling around the custom call
    flops = 2 * n_bonds * f_bonds.shape[1] * hidden                                       # W_i
    flops += (depth - 1) * (2 * n_bonds * n_bonds * hidden + 2 * n_bonds * hidden * hidden)  # M'@msg + W_h
    flops += 2 * n_atoms * n_bonds * hidden                                               # readout agg
    flops += 2 * n_atoms * f_atoms.shape[1] * hidden + 2 * n_atoms * hidden * hidden      # W_o
    flops += 2 * mp * n_atoms * hidden                                                    # mean pooling
    flops += 2 * mp * hidden * tp + 2 * mp * feats.shape[1] * tp                          # FFN
    bytes_accessed = sum(int(a.size) * a.dtype.itemsize for a in args) + mp * tp * 4
    cost = pl.CostEstimate(flops=int(flops), transcendentals=int(mp * tp),
                           bytes_accessed=int(bytes_accessed))

    vmem = pl.BlockSpec(memory_space=pltpu.MemorySpace.VMEM)
    # TODO(synk): at production batch sizes, switch to a molecule-chunked grid:
    #   - PrefetchScalarGridSpec with scope/graph offset tables in SMEM,
    #   - per-chunk block-diagonal M' blocks (bonds never cross molecules) so the structural
    #     operand stays small and VMEM-resident per grid step,
    #   - weight BlockSpecs with index_map -> (0,0) so weights are DMA'd once,
    #   - dimension_semantics=("parallel", ...) on the chunk axis (2 TCs on v7x),
    #   - tile/VMEM budgets re-derived for v7x's 64 MiB physical VMEM (not 128 MiB as on v5e/v6e).
    # This toy graph (~60 KB of operands) fits in a single VMEM block.
    out_pad = pl.pallas_call(
        functools.partial(mpnn_kernel, depth=depth),
        out_shape=jax.ShapeDtypeStruct((mp, tp), jnp.float32),
        in_specs=[vmem] * len(args),
        out_specs=vmem,
        compiler_params=pltpu.CompilerParams(vmem_limit_bytes=32 * 1024 * 1024),
        cost_estimate=cost,
    )(*args)
    return out_pad[:n_mols, :dim_target]


# ----------------------------- pure-JAX reference (gather semantics) -----------------------------
def reference_forward(f_atoms, f_bonds, a2b, b2a, b2revb, scope,
                      w_i, w_h, w_o_a, w_o_m, b_o,
                      feats, w_ffn_h, w_ffn_f, b_ffn, *, depth=DEPTH):
    inp = f_bonds @ w_i
    message = jnp.maximum(inp, 0.0)
    for _ in range(depth - 1):
        nei = message[a2b]                    # (n_atoms, max_nb, hidden)
        a_msg = nei.sum(axis=1)
        rev = message[b2revb]
        message = a_msg[b2a] - rev
        message = message @ w_h
        message = jnp.maximum(inp + message, 0.0)
    nei = message[a2b]
    a_msg = nei.sum(axis=1)
    atom_h = jnp.maximum(f_atoms @ w_o_a + a_msg @ w_o_m + b_o, 0.0)
    mol_vecs = scope @ atom_h
    logits = mol_vecs @ w_ffn_h + feats @ w_ffn_f + b_ffn
    return jax.nn.sigmoid(logits)


# ----------------------------- glue: synthetic graph + deterministic init -----------------------------
def xavier_normal(key, fan_in, fan_out):
    std = np.sqrt(2.0 / (fan_in + fan_out))
    return jax.random.normal(key, (fan_in, fan_out), dtype=jnp.float32) * std


def build_graph():
    """Two molecules, each an 8-atom ring; chemprop padding row 0 for atoms and bonds.

    Bond layout ("halves"): directed bond u->v of edge pair p lives at row 1+p, its reverse
    v->u at row half+1+p, so b2revb[i] == (i + half) % n_bonds structurally.  The reverse-bond
    subtraction is folded directly into the fused bond->bond operator:
        M' = B2A @ A2B - P_rev   (entries in {-1, 0, 1, 2} -> exact in bf16)
    so the kernel's depth loop is a single structural matmul per step.  Rows are padded to
    multiples of 8; all padded rows of f_bonds/f_atoms are zero, so padded messages stay zero.
    """
    n_real_atoms = 1 + N_MOLS * ATOMS_PER_MOL                 # 17 (row 0 = padding atom)
    n_pairs = N_MOLS * ATOMS_PER_MOL                          # 16 undirected edges
    atom_pad = _round_up(n_real_atoms, _SUBLANE)              # 24
    half = _round_up(1 + n_pairs, _SUBLANE)                   # 24 (row 0 = padding bond)
    bond_pad = 2 * half                                       # 48

    b2a = np.zeros(bond_pad, dtype=np.int32)
    b2revb = ((np.arange(bond_pad) + half) % bond_pad).astype(np.int32)
    a2b = np.zeros((atom_pad, MAX_NB), dtype=np.int32)
    nb = np.zeros(atom_pad, dtype=np.int32)
    atom_real = np.zeros(atom_pad, dtype=np.float32)
    atom_real[1:n_real_atoms] = 1.0
    bond_real = np.zeros(bond_pad, dtype=np.float32)

    for m in range(N_MOLS):
        a_off = 1 + m * ATOMS_PER_MOL
        for k in range(ATOMS_PER_MOL):
            u = a_off + k
            v = a_off + (k + 1) % ATOMS_PER_MOL
            p = m * ATOMS_PER_MOL + k
            f, r = 1 + p, half + 1 + p          # u->v and its reverse v->u
            b2a[f], b2a[r] = u, v
            bond_real[f] = bond_real[r] = 1.0
            a2b[v, nb[v]] = f; nb[v] += 1       # incoming bonds of v
            a2b[u, nb[u]] = r; nb[u] += 1       # incoming bonds of u

    # dense incidence operators for the kernel
    A2B = np.zeros((atom_pad, bond_pad), dtype=np.float32)    # atom <- incoming-bond counts
    for a in range(atom_pad):
        for b in a2b[a]:
            A2B[a, b] += 1.0
    B2A = np.zeros((bond_pad, atom_pad), dtype=np.float32)    # bond <- its source atom (one-hot)
    B2A[np.arange(bond_pad), b2a] = 1.0
    P_rev = np.zeros((bond_pad, bond_pad), dtype=np.float32)  # reverse-bond permutation
    P_rev[np.arange(bond_pad), b2revb] = 1.0
    # fused operator: (M' @ message)[b] == a_message[b2a[b]] - message[b2revb[b]]
    M_REV = B2A @ A2B - P_rev
    assert np.all(np.isin(M_REV, (-1.0, 0.0, 1.0, 2.0)))      # exact in bf16

    # per-molecule mean pooling weights (aggregation='mean')
    SCOPE = np.zeros((N_MOLS, atom_pad), dtype=np.float32)
    for i in range(N_MOLS):
        a_start = 1 + i * ATOMS_PER_MOL
        SCOPE[i, a_start:a_start + ATOMS_PER_MOL] = 1.0 / ATOMS_PER_MOL

    return dict(atom_pad=atom_pad, bond_pad=bond_pad, half=half,
                a2b=a2b, b2a=b2a, b2revb=b2revb,
                A2B=A2B, M_REV=M_REV, SCOPE=SCOPE,
                atom_real=atom_real, bond_real=bond_real)


if __name__ == "__main__":
    g = build_graph()
    key = jax.random.PRNGKey(0)
    keys = jax.random.split(key, 8)

    # graph features: padding rows (including chemprop row 0) are zero
    f_atoms = jax.random.normal(keys[0], (g["atom_pad"], ATOM_FDIM), dtype=jnp.float32)
    f_atoms = f_atoms * jnp.asarray(g["atom_real"])[:, None]
    f_bonds = jax.random.normal(keys[1], (g["bond_pad"], BOND_FDIM), dtype=jnp.float32)
    f_bonds = f_bonds * jnp.asarray(g["bond_real"])[:, None]
    feats = jax.random.normal(keys[2], (N_MOLS, DIM_FEATURES), dtype=jnp.float32)

    # parameters: xavier_normal for matrices, zeros for 1-D params (initialize_weights)
    w_i = xavier_normal(keys[3], BOND_FDIM, HIDDEN)                       # W_i (bias=False)
    w_h = xavier_normal(keys[4], HIDDEN, HIDDEN)                          # W_h (bias=False)
    w_o_full = xavier_normal(keys[5], ATOM_FDIM + HIDDEN, HIDDEN)         # W_o weight (split)
    w_o_a, w_o_m = w_o_full[:ATOM_FDIM], w_o_full[ATOM_FDIM:]
    b_o = jnp.zeros((1, HIDDEN), dtype=jnp.float32)                       # W_o bias -> 0
    w_ffn_full = xavier_normal(keys[6], HIDDEN + DIM_FEATURES, DIM_TARGET)
    w_ffn_h, w_ffn_f = w_ffn_full[:HIDDEN], w_ffn_full[HIDDEN:]
    b_ffn = jnp.zeros((1, DIM_TARGET), dtype=jnp.float32)                 # FFN bias -> 0

    out = mpnn_forward(f_atoms, f_bonds,
                       jnp.asarray(g["M_REV"]), jnp.asarray(g["A2B"]), jnp.asarray(g["SCOPE"]),
                       w_i, w_h, w_o_a, w_o_m, b_o,
                       feats, w_ffn_h, w_ffn_f, b_ffn,
                       depth=DEPTH)
    out = jax.block_until_ready(out)

    ref = reference_forward(f_atoms, f_bonds,
                            jnp.asarray(g["a2b"]), jnp.asarray(g["b2a"]), jnp.asarray(g["b2revb"]),
                            jnp.asarray(g["SCOPE"]),
                            w_i, w_h, w_o_a, w_o_m, b_o,
                            feats, w_ffn_h, w_ffn_f, b_ffn, depth=DEPTH)

    assert out.shape == (N_MOLS, DIM_TARGET)
    # tolerance is dominated by the per-iteration bf16 rounding of `message` (compounded over
    # depth-1 structural matmuls); the structural {-1,0,1,2} operands themselves are exact in bf16.
    max_err = float(np.max(np.abs(np.asarray(out) - np.asarray(ref))))
    assert np.allclose(np.asarray(out), np.asarray(ref), rtol=0.0, atol=2e-2), max_err
    print("KERNEL_OK")
</pallas_src>

<mosaic_0001>
module attributes {stable_mosaic.version = 11 : i64} {
  func.func @mpnn_kernel(%arg0: memref<24x16xf32, #tpu.memory_space<vmem>>, %arg1: memref<48x16xf32, #tpu.memory_space<vmem>>, %arg2: memref<48x48xbf16, #tpu.memory_space<vmem>>, %arg3: memref<24x48xbf16, #tpu.memory_space<vmem>>, %arg4: memref<8x24xf32, #tpu.memory_space<vmem>>, %arg5: memref<16x32xf32, #tpu.memory_space<vmem>>, %arg6: memref<32x32xf32, #tpu.memory_space<vmem>>, %arg7: memref<16x32xf32, #tpu.memory_space<vmem>>, %arg8: memref<32x32xf32, #tpu.memory_space<vmem>>, %arg9: memref<1x32xf32, #tpu.memory_space<vmem>>, %arg10: memref<8x8xf32, #tpu.memory_space<vmem>>, %arg11: memref<32x128xf32, #tpu.memory_space<vmem>>, %arg12: memref<8x128xf32, #tpu.memory_space<vmem>>, %arg13: memref<1x128xf32, #tpu.memory_space<vmem>>, %arg14: memref<8x128xf32, #tpu.memory_space<vmem>>) attributes {dimension_semantics = [], scalar_prefetch = 0 : i64, scratch_operands = 0 : i64, tpu.core_type = #tpu.core_type<tc>} {
    %c0 = arith.constant 0 : index
    %c0_0 = arith.constant 0 : index
    %0 = vector.load %arg0[%c0, %c0_0] : memref<24x16xf32, #tpu.memory_space<vmem>>, vector<24x16xf32>
    %c0_1 = arith.constant 0 : index
    %c0_2 = arith.constant 0 : index
    %1 = vector.load %arg1[%c0_1, %c0_2] : memref<48x16xf32, #tpu.memory_space<vmem>>, vector<48x16xf32>
    %c0_3 = arith.constant 0 : index
    %c0_4 = arith.constant 0 : index
    %2 = vector.load %arg2[%c0_3, %c0_4] : memref<48x48xbf16, #tpu.memory_space<vmem>>, vector<48x48xbf16>
    %c0_5 = arith.constant 0 : index
    %c0_6 = arith.constant 0 : index
    %3 = vector.load %arg3[%c0_5, %c0_6] : memref<24x48xbf16, #tpu.memory_space<vmem>>, vector<24x48xbf16>
    %c0_7 = arith.constant 0 : index
    %c0_8 = arith.constant 0 : index
    %4 = vector.load %arg6[%c0_7, %c0_8] : memref<32x32xf32, #tpu.memory_space<vmem>>, vector<32x32xf32>
    %c0_9 = arith.constant 0 : index
    %c0_10 = arith.constant 0 : index
    %5 = vector.load %arg5[%c0_9, %c0_10] : memref<16x32xf32, #tpu.memory_space<vmem>>, vector<16x32xf32>
    %cst = arith.constant dense<0.000000e+00> : vector<48x32xf32>
    %6 = tpu.matmul %1, %5, %cst {dimension_numbers = #tpu.dot_dimension_numbers<[1], [0], [0], [1], [0, 0, 1, 1], [], []>} : vector<48x16xf32>, vector<16x32xf32>, vector<48x32xf32> -> vector<48x32xf32>
    %cst_11 = arith.constant 0.000000e+00 : f32
    %7 = vector.broadcast %cst_11 : f32 to vector<48x32xf32>
    %8 = arith.maximumf %6, %7 : vector<48x32xf32>
    %9 = arith.truncf %8 : vector<48x32xf32> to vector<48x32xbf16>
    %cst_12 = arith.constant dense<0.000000e+00> : vector<48x32xf32>
    %10 = tpu.matmul %2, %9, %cst_12 {dimension_numbers = #tpu.dot_dimension_numbers<[1], [0], [0], [1], [0, 0, 1, 1], [], []>} : vector<48x48xbf16>, vector<48x32xbf16>, vector<48x32xf32> -> vector<48x32xf32>
    %cst_13 = arith.constant dense<0.000000e+00> : vector<48x32xf32>
    %11 = tpu.matmul %10, %4, %cst_13 {dimension_numbers = #tpu.dot_dimension_numbers<[1], [0], [0], [1], [0, 0, 1, 1], [], []>} : vector<48x32xf32>, vector<32x32xf32>, vector<48x32xf32> -> vector<48x32xf32>
    %12 = arith.addf %6, %11 : vector<48x32xf32>
    %cst_14 = arith.constant 0.000000e+00 : f32
    %13 = vector.broadcast %cst_14 : f32 to vector<48x32xf32>
    %14 = arith.maximumf %12, %13 : vector<48x32xf32>
    %15 = arith.truncf %14 : vector<48x32xf32> to vector<48x32xbf16>
    %cst_15 = arith.constant dense<0.000000e+00> : vector<48x32xf32>
    %16 = tpu.matmul %2, %15, %cst_15 {dimension_numbers = #tpu.dot_dimension_numbers<[1], [0], [0], [1], [0, 0, 1, 1], [], []>} : vector<48x48xbf16>, vector<48x32xbf16>, vector<48x32xf32> -> vector<48x32xf32>
    %cst_16 = arith.constant dense<0.000000e+00> : vector<48x32xf32>
    %17 = tpu.matmul %16, %4, %cst_16 {dimension_numbers = #tpu.dot_dimension_numbers<[1], [0], [0], [1], [0, 0, 1, 1], [], []>} : vector<48x32xf32>, vector<32x32xf32>, vector<48x32xf32> -> vector<48x32xf32>
    %18 = arith.addf %6, %17 : vector<48x32xf32>
    %cst_17 = arith.constant 0.000000e+00 : f32
    %19 = vector.broadcast %cst_17 : f32 to vector<48x32xf32>
    %20 = arith.maximumf %18, %19 : vector<48x32xf32>
    %21 = arith.truncf %20 : vector<48x32xf32> to vector<48x32xbf16>
    %cst_18 = arith.constant dense<0.000000e+00> : vector<24x32xf32>
    %22 = tpu.matmul %3, %21, %cst_18 {dimension_numbers = #tpu.dot_dimension_numbers<[1], [0], [0], [1], [0, 0, 1, 1], [], []>} : vector<24x48xbf16>, vector<48x32xbf16>, vector<24x32xf32> -> vector<24x32xf32>
    %c0_19 = arith.constant 0 : index
    %c0_20 = arith.constant 0 : index
    %23 = vector.load %arg7[%c0_19, %c0_20] : memref<16x32xf32, #tpu.memory_space<vmem>>, vector<16x32xf32>
    %cst_21 = arith.constant dense<0.000000e+00> : vector<24x32xf32>
    %24 = tpu.matmul %0, %23, %cst_21 {dimension_numbers = #tpu.dot_dimension_numbers<[1], [0], [0], [1], [0, 0, 1, 1], [], []>} : vector<24x16xf32>, vector<16x32xf32>, vector<24x32xf32> -> vector<24x32xf32>
    %c0_22 = arith.constant 0 : index
    %c0_23 = arith.constant 0 : index
    %25 = vector.load %arg8[%c0_22, %c0_23] : memref<32x32xf32, #tpu.memory_space<vmem>>, vector<32x32xf32>
    %cst_24 = arith.constant dense<0.000000e+00> : vector<24x32xf32>
    %26 = tpu.matmul %22, %25, %cst_24 {dimension_numbers = #tpu.dot_dimension_numbers<[1], [0], [0], [1], [0, 0, 1, 1], [], []>} : vector<24x32xf32>, vector<32x32xf32>, vector<24x32xf32> -> vector<24x32xf32>
    %27 = arith.addf %24, %26 : vector<24x32xf32>
    %c0_25 = arith.constant 0 : index
    %c0_26 = arith.constant 0 : index
    %28 = vector.load %arg9[%c0_25, %c0_26] : memref<1x32xf32, #tpu.memory_space<vmem>>, vector<1x32xf32>
    %29 = vector.broadcast %28 : vector<1x32xf32> to vector<24x32xf32>
    %30 = arith.addf %27, %29 : vector<24x32xf32>
    %cst_27 = arith.constant 0.000000e+00 : f32
    %31 = vector.broadcast %cst_27 : f32 to vector<24x32xf32>
    %32 = arith.maximumf %30, %31 : vector<24x32xf32>
    %c0_28 = arith.constant 0 : index
    %c0_29 = arith.constant 0 : index
    %33 = vector.load %arg4[%c0_28, %c0_29] : memref<8x24xf32, #tpu.memory_space<vmem>>, vector<8x24xf32>
    %cst_30 = arith.constant dense<0.000000e+00> : vector<8x32xf32>
    %34 = tpu.matmul %33, %32, %cst_30 {dimension_numbers = #tpu.dot_dimension_numbers<[1], [0], [0], [1], [0, 0, 1, 1], [], []>} : vector<8x24xf32>, vector<24x32xf32>, vector<8x32xf32> -> vector<8x32xf32>
    %c0_31 = arith.constant 0 : index
    %c0_32 = arith.constant 0 : index
    %35 = vector.load %arg11[%c0_31, %c0_32] : memref<32x128xf32, #tpu.memory_space<vmem>>, vector<32x128xf32>
    %cst_33 = arith.constant dense<0.000000e+00> : vector<8x128xf32>
    %36 = tpu.matmul %34, %35, %cst_33 {dimension_numbers = #tpu.dot_dimension_numbers<[1], [0], [0], [1], [0, 0, 1, 1], [], []>} : vector<8x32xf32>, vector<32x128xf32>, vector<8x128xf32> -> vector<8x128xf32>
    %c0_34 = arith.constant 0 : index
    %c0_35 = arith.constant 0 : index
    %37 = vector.load %arg10[%c0_34, %c0_35] : memref<8x8xf32, #tpu.memory_space<vmem>>, vector<8x8xf32>
    %c0_36 = arith.constant 0 : index
    %c0_37 = arith.constant 0 : index
    %38 = vector.load %arg12[%c0_36, %c0_37] : memref<8x128xf32, #tpu.memory_space<vmem>>, vector<8x128xf32>
    %cst_38 = arith.constant dense<0.000000e+00> : vector<8x128xf32>
    %39 = tpu.matmul %37, %38, %cst_38 {dimension_numbers = #tpu.dot_dimension_numbers<[1], [0], [0], [1], [0, 0, 1, 1], [], []>} : vector<8x8xf32>, vector<8x128xf32>, vector<8x128xf32> -> vector<8x128xf32>
    %40 = arith.addf %36, %39 : vector<8x128xf32>
    %c0_39 = arith.constant 0 : index
    %c0_40 = arith.constant 0 : index
    %41 = vector.load %arg13[%c0_39, %c0_40] : memref<1x128xf32, #tpu.memory_space<vmem>>, vector<1x128xf32>
    %42 = vector.broadcast %41 : vector<1x128xf32> to vector<8x128xf32>
    %43 = arith.addf %40, %42 : vector<8x128xf32>
    %44 = arith.negf %43 : vector<8x128xf32>
    %45 = math.exp %44 : vector<8x128xf32>
    %cst_41 = arith.constant 1.000000e+00 : f32
    %46 = vector.broadcast %cst_41 : f32 to vector<8x128xf32>
    %47 = arith.addf %46, %45 : vector<8x128xf32>
    %48 = arith.divf %46, %47 : vector<8x128xf32>
    %c0_42 = arith.constant 0 : index
    %c0_43 = arith.constant 0 : index
    %49 = vector.load %arg14[%c0_42, %c0_43] : memref<8x128xf32, #tpu.memory_space<vmem>>, vector<8x128xf32>
    tpu.vector_store %arg14[%c0_42, %c0_43], %48 {strides = array<i32>} : memref<8x128xf32, #tpu.memory_space<vmem>>, vector<8x128xf32>,
    return
  }
}

</mosaic_0001>

<llo_original>
// kernel: tpu_custom_call.1
$region0: #{tpu_custom_call.1}
  #allocation0 [shape = 'u32[]', space=smem, size = 0x4, offset = 0x4, fixed_abs, tag = 'smem constant byte address 0x4 - core index']
  #allocation1 [shape = 'u32[144,128]{1,0:T(1,128)}', space=vmem, size = 0x12000, scoped, tag = 'internal scratch']
  %s0 = inlined_call_operand.vmem [shape: f32[24,16], index: 0, kind: input, shape index: {}]
  %s1 = inlined_call_operand.vmem [shape: f32[48,16], index: 1, kind: input, shape index: {}]
  %s2 = inlined_call_operand.hbm [shape: bf16[48,48], index: 2, kind: input, shape index: {}]
  %s3 = inlined_call_operand.hbm [shape: bf16[24,48], index: 3, kind: input, shape index: {}]
  %s4 = inlined_call_operand.hbm [shape: f32[8,24], index: 4, kind: input, shape index: {}]
  %s5 = inlined_call_operand.vmem [shape: f32[16,32], index: 5, kind: input, shape index: {}]
  %s6 = inlined_call_operand.vmem [shape: f32[32,32], index: 6, kind: input, shape index: {}]
  %s7 = inlined_call_operand.hbm [shape: f32[16,32], index: 7, kind: input, shape index: {}]
  %s8 = inlined_call_operand.vmem [shape: f32[32,32], index: 8, kind: input, shape index: {}]
  %s9 = inlined_call_operand.hbm [shape: f32[1,32], index: 9, kind: input, shape index: {}]
  %s10 = inlined_call_operand.vmem [shape: f32[8,8], index: 10, kind: input, shape index: {}]
  %s11 = inlined_call_operand.vmem [shape: f32[32,128], index: 11, kind: input, shape index: {}]
  %s12 = inlined_call_operand.hbm [shape: f32[8,128], index: 12, kind: input, shape index: {}]
  %s13 = inlined_call_operand.vmem [shape: f32[1,128], index: 13, kind: input, shape index: {}]
  %s14 = inlined_call_operand.hbm [shape: f32[8,128], index: 14, kind: output, shape index: {}]
  %s15 = sld [smem:[#allocation0]]
  $region90: #{tpu_custom_call.1} parent=0
    _
  %s17 = ssub.s32 1, %s15
  %s18 = scalar_select 0, %s17, %s15
  $region1: #{tpu_custom_call.1} parent=0
    #allocation2 [shape = 'u8[12288]{0}', space=vmem, size = 0x3000, scoped, tag = 'input window, operand 2, single buffered']
    #allocation3 [shape = 's32[1]{0}', space=sflag, size = 0x4, scoped, tag = 'scoped memory for tpu_custom_call.1']
    #allocation4 [shape = 's32[1]{0}', space=sflag, size = 0x4, scoped, tag = 'scoped memory for tpu_custom_call.1']
    #allocation5 [shape = 'u8[6144]{0}', space=vmem, size = 0x1800, scoped, tag = 'input window, operand 3, single buffered']
    #allocation6 [shape = 's32[1]{0}', space=sflag, size = 0x4, scoped, tag = 'scoped memory for tpu_custom_call.1']
    #allocation7 [shape = 'u8[4096]{0}', space=vmem, size = 0x1000, scoped, tag = 'input window, operand 4, single buffered']
    #allocation8 [shape = 'u8[8192]{0}', space=vmem, size = 0x2000, scoped, tag = 'input window, operand 7, single buffered']
    #allocation9 [shape = 's32[1]{0}', space=sflag, size = 0x4, scoped, tag = 'scoped memory for tpu_custom_call.1']
    #allocation10 [shape = 'u8[512]{0}', space=vmem, size = 0x400, scoped, tag = 'input window, operand 9, single buffered']
    #allocation11 [shape = 'u8[4096]{0}', space=vmem, size = 0x1000, scoped, tag = 'input window, operand 12, single buffered']
    #allocation12 [shape = 's32[1]{0}', space=sflag, size = 0x4, scoped, tag = 'scoped memory for tpu_custom_call.1']
    #allocation13 [shape = 'u8[4096]{0}', space=vmem, size = 0x1000, scoped, tag = 'output window, operand 0, single buffered']
    %19 = vsyncpa [#allocation3], 0
    %20 = vsyncpa [#allocation6], 0
    %21 = vsyncpa [#allocation9], 0
    %22 = vsyncpa [#allocation12], 0
    %23 = vsyncpa [#allocation4], 0
    // Predicated region
    $region2: #{tpu_custom_call.1} parent=1 // pred_check
      _
    $region3: #{tpu_custom_call.1} parent=1 // pred_check_branch
      %25 = sbr.rel (0) target = $region5
    $region4: #{tpu_custom_call.1} parent=1 // pred_region
      _
    $region5: #{tpu_custom_call.1} parent=1 // pred_fallthru
      _
    // Predicated region
    $region6: #{tpu_custom_call.1} parent=1 // pred_check
      _
    $region7: #{tpu_custom_call.1} parent=1 // pred_check_branch
      %27 = sbr.rel (0) target = $region9
    $region8: #{tpu_custom_call.1} parent=1 // pred_region
      _
    $region9: #{tpu_custom_call.1} parent=1 // pred_fallthru
      _
    // Predicated region
    $region10: #{tpu_custom_call.1} parent=1 // pred_check
      _
    $region11: #{tpu_custom_call.1} parent=1 // pred_check_branch
      %29 = sbr.rel (0) target = $region13
    $region12: #{tpu_custom_call.1} parent=1 // pred_region
      %s31 = ssub.s32 384, 384
      %32 = vsyncadd [#allocation3], %s31
      %s33 = sshll.u32 [#allocation2], 4
      %s34 = int_to_ptr.vmem [resolvable:$true] %s33
      %39 = dma.hbm_to_vmem [thread:$0]  %s2, 384, %s34, [#allocation3], 64, 64, 4
    $region13: #{tpu_custom_call.1} parent=1 // pred_fallthru
      _
    // Predicated region
    $region14: #{tpu_custom_call.1} parent=1 // pred_check
      _
    $region15: #{tpu_custom_call.1} parent=1 // pred_check_branch
      %41 = sbr.rel (0) target = $region17
    $region16: #{tpu_custom_call.1} parent=1 // pred_region
      %s43 = ssub.s32 192, 192
      %44 = vsyncadd [#allocation6], %s43
      %s45 = sshll.u32 [#allocation5], 4
      %s46 = int_to_ptr.vmem [resolvable:$true] %s45
      %51 = dma.hbm_to_vmem [thread:$0]  %s3, 192, %s46, [#allocation6], 64, 64, 4
    $region17: #{tpu_custom_call.1} parent=1 // pred_fallthru
      _
    // Predicated region
    $region18: #{tpu_custom_call.1} parent=1 // pred_check
      _
    $region19: #{tpu_custom_call.1} parent=1 // pred_check_branch
      %53 = sbr.rel (0) target = $region21
    $region20: #{tpu_custom_call.1} parent=1 // pred_region
      %s55 = ssub.s32 128, 128
      %56 = vsyncadd [#allocation6], %s55
      %s58 = sshll.u32 [#allocation7], 4
      %s59 = int_to_ptr.vmem [resolvable:$true] %s58
      %61 = dma.hbm_to_vmem [thread:$0]  %s4, 128, %s59, [#allocation6]
    $region21: #{tpu_custom_call.1} parent=1 // pred_fallthru
      _
    // Predicated region
    $region22: #{tpu_custom_call.1} parent=1 // pred_check
      _
    $region23: #{tpu_custom_call.1} parent=1 // pred_check_branch
      %63 = sbr.rel (0) target = $region25
    $region24: #{tpu_custom_call.1} parent=1 // pred_region
      _
    $region25: #{tpu_custom_call.1} parent=1 // pred_fallthru
      _
    // Predicated region
    $region26: #{tpu_custom_call.1} parent=1 // pred_check
      _
    $region27: #{tpu_custom_call.1} parent=1 // pred_check_branch
      %65 = sbr.rel (0) target = $region29
    $region28: #{tpu_custom_call.1} parent=1 // pred_region
      _
    $region29: #{tpu_custom_call.1} parent=1 // pred_fallthru
      _
    // Predicated region
    $region30: #{tpu_custom_call.1} parent=1 // pred_check
      _
    $region31: #{tpu_custom_call.1} parent=1 // pred_check_branch
      %67 = sbr.rel (0) target = $region33
    $region32: #{tpu_custom_call.1} parent=1 // pred_region
      %s69 = ssub.s32 256, 256
      %70 = vsyncadd [#allocation9], %s69
      %s71 = sshll.u32 [#allocation8], 4
      %s72 = int_to_ptr.vmem [resolvable:$true] %s71
      %77 = dma.hbm_to_vmem [thread:$0]  %s7, 256, %s72, [#allocation9], 128, 128, 8
    $region33: #{tpu_custom_call.1} parent=1 // pred_fallthru
      _
    // Predicated region
    $region34: #{tpu_custom_call.1} parent=1 // pred_check
      _
    $region35: #{tpu_custom_call.1} parent=1 // pred_check_branch
      %79 = sbr.rel (0) target = $region37
    $region36: #{tpu_custom_call.1} parent=1 // pred_region
      _
    $region37: #{tpu_custom_call.1} parent=1 // pred_fallthru
      _
    // Predicated region
    $region38: #{tpu_custom_call.1} parent=1 // pred_check
      _
    $region39: #{tpu_custom_call.1} parent=1 // pred_check_branch
      %81 = sbr.rel (0) target = $region41
    $region40: #{tpu_custom_call.1} parent=1 // pred_region
      %s83 = ssub.s32 16, 16
      %84 = vsyncadd [#allocation9], %s83
      %s86 = sshll.u32 [#allocation10], 4
      %s87 = int_to_ptr.vmem [resolvable:$true] %s86
      %89 = dma.hbm_to_vmem [thread:$0]  %s9, 16, %s87, [#allocation9]
    $region41: #{tpu_custom_call.1} parent=1 // pred_fallthru
      _
    // Predicated region
    $region42: #{tpu_custom_call.1} parent=1 // pred_check
      _
    $region43: #{tpu_custom_call.1} parent=1 // pred_check_branch
      %91 = sbr.rel (0) target = $region45
    $region44: #{tpu_custom_call.1} parent=1 // pred_region
      _
    $region45: #{tpu_custom_call.1} parent=1 // pred_fallthru
      _
    // Predicated region
    $region46: #{tpu_custom_call.1} parent=1 // pred_check
      _
    $region47: #{tpu_custom_call.1} parent=1 // pred_check_branch
      %93 = sbr.rel (0) target = $region49
    $region48: #{tpu_custom_call.1} parent=1 // pred_region
      _
    $region49: #{tpu_custom_call.1} parent=1 // pred_fallthru
      _
    // Predicated region
    $region50: #{tpu_custom_call.1} parent=1 // pred_check
      _
    $region51: #{tpu_custom_call.1} parent=1 // pred_check_branch
      %95 = sbr.rel (0) target = $region53
    $region52: #{tpu_custom_call.1} parent=1 // pred_region
      %s97 = ssub.s32 128, 128
      %98 = vsyncadd [#allocation12], %s97
      %s100 = sshll.u32 [#allocation11], 4
      %s101 = int_to_ptr.vmem [resolvable:$true] %s100
      %103 = dma.hbm_to_vmem [thread:$0]  %s12, 128, %s101, [#allocation12]
    $region53: #{tpu_custom_call.1} parent=1 // pred_fallthru
      _
    // Predicated region
    $region54: #{tpu_custom_call.1} parent=1 // pred_check
      _
    $region55: #{tpu_custom_call.1} parent=1 // pred_check_branch
      %105 = sbr.rel (0) target = $region57
    $region56: #{tpu_custom_call.1} parent=1 // pred_region
      _
    $region57: #{tpu_custom_call.1} parent=1 // pred_fallthru
      _
    // Predicated region
    $region58: #{tpu_custom_call.1} parent=1 // pred_check
      _
    $region59: #{tpu_custom_call.1} parent=1 // pred_check_branch
      %107 = sbr.rel (0) target = $region61
    $region60: #{tpu_custom_call.1} parent=1 // pred_region
      %108 = dma.done [#allocation3], 384
    $region61: #{tpu_custom_call.1} parent=1 // pred_fallthru
      _
    // Predicated region
    $region62: #{tpu_custom_call.1} parent=1 // pred_check
      _
    $region63: #{tpu_custom_call.1} parent=1 // pred_check_branch
      %110 = sbr.rel (0) target = $region65
    $region64: #{tpu_custom_call.1} parent=1 // pred_region
      %111 = dma.done [#allocation6], 192
    $region65: #{tpu_custom_call.1} parent=1 // pred_fallthru
      _
    // Predicated region
    $region66: #{tpu_custom_call.1} parent=1 // pred_check
      _
    $region67: #{tpu_custom_call.1} parent=1 // pred_check_branch
      %113 = sbr.rel (0) target = $region69
    $region68: #{tpu_custom_call.1} parent=1 // pred_region
      %114 = dma.done [#allocation6], 128
    $region69: #{tpu_custom_call.1} parent=1 // pred_fallthru
      _
    // Predicated region
    $region70: #{tpu_custom_call.1} parent=1 // pred_check
      _
    $region71: #{tpu_custom_call.1} parent=1 // pred_check_branch
      %116 = sbr.rel (0) target = $region73
    $region72: #{tpu_custom_call.1} parent=1 // pred_region
      %117 = dma.done [#allocation9], 256
    $region73: #{tpu_custom_call.1} parent=1 // pred_fallthru
      _
    // Predicated region
    $region74: #{tpu_custom_call.1} parent=1 // pred_check
      _
    $region75: #{tpu_custom_call.1} parent=1 // pred_check_branch
      %119 = sbr.rel (0) target = $region77
    $region76: #{tpu_custom_call.1} parent=1 // pred_region
      %120 = dma.done [#allocation9], 16
    $region77: #{tpu_custom_call.1} parent=1 // pred_fallthru
      _
    // Predicated region
    $region78: #{tpu_custom_call.1} parent=1 // pred_check
      _
    $region79: #{tpu_custom_call.1} parent=1 // pred_check_branch
      %122 = sbr.rel (0) target = $region81
    $region80: #{tpu_custom_call.1} parent=1 // pred_region
      %123 = dma.done [#allocation12], 128
    $region81: #{tpu_custom_call.1} parent=1 // pred_fallthru
      _
    %v125 = vld [vmem:[%s0] sm:$0xff]
    %v126 = vld [vmem:[%s0 + $0x8] sm:$0xff]
    %v127 = vld [vmem:[%s0 + $0x10] sm:$0xff]
    %v128 = vld [vmem:[%s1] sm:$0xff]
    %v129 = vld [vmem:[%s1 + $0x8] sm:$0xff]
    %v130 = vld [vmem:[%s1 + $0x10] sm:$0xff]
    %v131 = vld [vmem:[%s1 + $0x18] sm:$0xff]
    %v132 = vld [vmem:[%s1 + $0x20] sm:$0xff]
    %v133 = vld [vmem:[%s1 + $0x28] sm:$0xff]
    %v134 = vld [vmem:[#allocation2] sm:$0xf]
    %v135 = vld [vmem:[#allocation2 + $0x4] sm:$0xf]
    %v136 = vld [vmem:[#allocation2 + $0x8] sm:$0xf]
    %v137 = vld [vmem:[#allocation2 + $0xc] sm:$0xf]
    %v138 = vld [vmem:[#allocation2 + $0x10] sm:$0xf]
    %v139 = vld [vmem:[#allocation2 + $0x14] sm:$0xf]
    %v140 = vld [vmem:[#allocation5] sm:$0xf]
    %v141 = vld [vmem:[#allocation5 + $0x4] sm:$0xf]
    %v142 = vld [vmem:[#allocation5 + $0x8] sm:$0xf]
    %v143 = vld [vmem:[%s6] sm:$0xff]
    %v144 = vld [vmem:[%s6 + $0x8] sm:$0xff]
    %v145 = vld [vmem:[%s6 + $0x10] sm:$0xff]
    %v146 = vld [vmem:[%s6 + $0x18] sm:$0xff]
    %v147 = vld [vmem:[%s5] sm:$0xff]
    %v148 = vld [vmem:[%s5 + $0x8] sm:$0xff]
    %vm149 = vcmask 130048
    %v151 = vsel %vm149, %v128, 0
    %v154 = vsel %vm149, %v129, 0
    %v157 = vsel %vm149, %v130, 0
    %v160 = vsel %vm149, %v131, 0
    %v163 = vsel %vm149, %v132, 0
    %v166 = vsel %vm149, %v133, 0
    %168 = vmatprep.subr.mxu0 0.0
    %169 = vmatpush1.msra.mxu0 0.0
    %170 = vmatprep.subr.mxu0 0.0
    %171 = vmatpush1.msra.mxu0 0.0
    %172 = vmatprep.subr.mxu0 0.0
    %173 = vmatpush1.msra.mxu0 0.0
    %174 = vmatprep.subr.mxu0 0.0
    %175 = vmatpush1.msra.mxu0 0.0
    %176 = vmatprep.subr.mxu0 0.0
    %177 = vmatpush1.msra.mxu0 0.0
    %178 = vmatprep.subr.mxu0 0.0
    %179 = vmatpush1.msra.mxu0 0.0
    %180 = vmatprep.subr.mxu0 0.0
    %181 = vmatpush1.msra.mxu0 0.0
    %182 = vmatprep.subr.mxu0 0.0
    %183 = vmatpush1.msra.mxu0 0.0
    %184 = vmatprep.subr.mxu0 0.0
    %185 = vmatpush1.msra.mxu0 0.0
    %186 = vmatprep.subr.mxu0 0.0
    %187 = vmatpush1.msra.mxu0 0.0
    %188 = vmatprep.subr.mxu0 0.0
    %189 = vmatpush1.msra.mxu0 0.0
    %190 = vmatprep.subr.mxu0 0.0
    %191 = vmatpush1.msra.mxu0 0.0
    %192 = vmatprep.subr.mxu0 0.0
    %193 = vmatpush1.msra.mxu0 0.0
    %194 = vmatprep.subr.mxu0 0.0
    %195 = vmatpush1.msra.mxu0 0.0
    %196 = vmatprep.subr.mxu0 0.0
    %197 = vmatpush1.msra.mxu0 %v148
    %198 = vmatprep.subr.mxu0 0.0
    %199 = vmatpush1.msra.mxu0 %v147
    %200 = vmatprep.subr.mxu0 0.0
    %201 = vmatpush2.msra.mxu0 0.0
    %202 = vmatprep.subr.mxu0 0.0
    %203 = vmatpush2.msra.mxu0 0.0
    %204 = vmatprep.subr.mxu0 0.0
    %205 = vmatpush2.msra.mxu0 0.0
    %206 = vmatprep.subr.mxu0 0.0
    %207 = vmatpush2.msra.mxu0 0.0
    %208 = vmatprep.subr.mxu0 0.0
    %209 = vmatpush2.msra.mxu0 0.0
    %210 = vmatprep.subr.mxu0 0.0
    %211 = vmatpush2.msra.mxu0 0.0
    %212 = vmatprep.subr.mxu0 0.0
    %213 = vmatpush2.msra.mxu0 0.0
    %214 = vmatprep.subr.mxu0 0.0
    %215 = vmatpush2.msra.mxu0 0.0
    %216 = vmatprep.subr.mxu0 0.0
    %217 = vmatpush2.msra.mxu0 0.0
    %218 = vmatprep.subr.mxu0 0.0
    %219 = vmatpush2.msra.mxu0 0.0
    %220 = vmatprep.subr.mxu0 0.0
    %221 = vmatpush2.msra.mxu0 0.0
    %222 = vmatprep.subr.mxu0 0.0
    %223 = vmatpush2.msra.mxu0 0.0
    %224 = vmatprep.subr.mxu0 0.0
    %225 = vmatpush2.msra.mxu0 0.0
    %226 = vmatprep.subr.mxu0 0.0
    %227 = vmatpush2.msra.mxu0 0.0
    %228 = vmatprep.subr.mxu0 0.0
    %229 = vmatpush2.msra.mxu0 0.0
    %230 = vmatprep.subr.mxu0 0.0
    %231 = vmatpush2.msra.mxu0 0.0
    %232 = vmatprep.mubr.f32.mxu0 0.0
    %233 = vmatmul.mubr.f32.gmra.mxu0 %v151
    %v234 = vpop.f32.mrf.mxu0
    %v235 = vadd.f32 0.0, %v234
    %v236 = vpop.f32.mrf.mxu0
    %237 = vmatprep.mubr.f32.mxu0 0.0
    %238 = vmatmul.mubr.f32.gmra.mxu0 %v154
    %v239 = vpop.f32.mrf.mxu0
    %v240 = vadd.f32 0.0, %v239
    %v241 = vpop.f32.mrf.mxu0
    %242 = vmatprep.mubr.f32.mxu0 0.0
    %243 = vmatmul.mubr.f32.gmra.mxu0 %v157
    %v244 = vpop.f32.mrf.mxu0
    %v245 = vadd.f32 0.0, %v244
    %v246 = vpop.f32.mrf.mxu0
    %247 = vmatprep.mubr.f32.mxu0 0.0
    %248 = vmatmul.mubr.f32.gmra.mxu0 %v160
    %v249 = vpop.f32.mrf.mxu0
    %v250 = vadd.f32 0.0, %v249
    %v251 = vpop.f32.mrf.mxu0
    %252 = vmatprep.mubr.f32.mxu0 0.0
    %253 = vmatmul.mubr.f32.gmra.mxu0 %v163
    %v254 = vpop.f32.mrf.mxu0
    %v255 = vadd.f32 0.0, %v254
    %v256 = vpop.f32.mrf.mxu0
    %257 = vmatprep.mubr.f32.mxu0 0.0
    %258 = vmatmul.mubr.f32.gmra.mxu0 %v166
    %v259 = vpop.f32.mrf.mxu0
    %v260 = vadd.f32 0.0, %v259
    %v261 = vpop.f32.mrf.mxu0
    %262 = vdwg.mxu0
    %v263 = vmax.f32 %v235, 0.0
    %v264 = vmax.f32 %v240, 0.0
    %v265 = vmax.f32 %v245, 0.0
    %v266 = vmax.f32 %v250, 0.0
    %v267 = vmax.f32 %v255, 0.0
    %v268 = vmax.f32 %v260, 0.0
    %v269 = vpack.c.bf16 %v264, %v263
    %v270 = vpack.c.bf16 %v266, %v265
    %v271 = vpack.c.bf16 %v268, %v267
    %v278 = vunpack.c.l.b16 %v134
    %v279 = vunpack.c.l.b16 %v135
    %v280 = vunpack.c.l.b16 %v136
    %v281 = vunpack.c.l.b16 %v137
    %v282 = vunpack.c.l.b16 %v138
    %v283 = vunpack.c.l.b16 %v139
    %v284 = vpack.c.b16 %v279, %v278
    %v285 = vpack.c.b16 %v281, %v280
    %v286 = vpack.c.b16 %v283, %v282
    %vm287 = vcmask 392192
    %v289 = vsel %vm287, %v284, 0
    %v292 = vsel %vm287, %v285, 0
    %v295 = vsel %vm287, %v286, 0
    %297 = vmatprep.subr.bf16.mxu0 0
    %298 = vmatpush1.bf16.msra.mxu0 0
    %299 = vmatprep.subr.bf16.mxu0 0
    %300 = vmatpush1.bf16.msra.mxu0 0
    %301 = vmatprep.subr.bf16.mxu0 0
    %302 = vmatpush1.bf16.msra.mxu0 0
    %303 = vmatprep.subr.bf16.mxu0 0
    %304 = vmatpush1.bf16.msra.mxu0 0
    %305 = vmatprep.subr.bf16.mxu0 0
    %306 = vmatpush1.bf16.msra.mxu0 0
    %307 = vmatprep.subr.bf16.mxu0 0
    %308 = vmatpush1.bf16.msra.mxu0 %v271
    %309 = vmatprep.subr.bf16.mxu0 0
    %310 = vmatpush1.bf16.msra.mxu0 %v270
    %311 = vmatprep.subr.bf16.mxu0 0
    %312 = vmatpush1.bf16.msra.mxu0 %v269
    %313 = vmatprep.subr.bf16.mxu0 0
    %314 = vmatpush2.bf16.msra.mxu0 0
    %315 = vmatprep.subr.bf16.mxu0 0
    %316 = vmatpush2.bf16.msra.mxu0 0
    %317 = vmatprep.subr.bf16.mxu0 0
    %318 = vmatpush2.bf16.msra.mxu0 0
    %319 = vmatprep.subr.bf16.mxu0 0
    %320 = vmatpush2.bf16.msra.mxu0 0
    %321 = vmatprep.subr.bf16.mxu0 0
    %322 = vmatpush2.bf16.msra.mxu0 0
    %323 = vmatprep.subr.bf16.mxu0 0
    %324 = vmatpush2.bf16.msra.mxu0 0
    %325 = vmatprep.subr.bf16.mxu0 0
    %326 = vmatpush2.bf16.msra.mxu0 0
    %327 = vmatprep.subr.bf16.mxu0 0
    %328 = vmatpush2.bf16.msra.mxu0 0
    %329 = vmatprep.mubr.bf16.mxu0 0
    %330 = vmatmul.mubr.bf16.gmra.mxu0 %v289
    %v331 = vpop.f32.mrf.mxu0
    %v332 = vadd.f32 0.0, %v331
    %v333 = vpop.f32.mrf.mxu0
    %v334 = vpop.f32.mrf.mxu0
    %v335 = vadd.f32 0.0, %v334
    %v336 = vpop.f32.mrf.mxu0
    %337 = vmatprep.mubr.bf16.mxu0 0
    %338 = vmatmul.mubr.bf16.gmra.mxu0 %v292
    %v339 = vpop.f32.mrf.mxu0
    %v340 = vadd.f32 0.0, %v339
    %v341 = vpop.f32.mrf.mxu0
    %v342 = vpop.f32.mrf.mxu0
    %v343 = vadd.f32 0.0, %v342
    %v344 = vpop.f32.mrf.mxu0
    %345 = vmatprep.mubr.bf16.mxu0 0
    %346 = vmatmul.mubr.bf16.gmra.mxu0 %v295
    %v347 = vpop.f32.mrf.mxu0
    %v348 = vadd.f32 0.0, %v347
    %v349 = vpop.f32.mrf.mxu0
    %v350 = vpop.f32.mrf.mxu0
    %v351 = vadd.f32 0.0, %v350
    %v352 = vpop.f32.mrf.mxu0
    %353 = vdwg.mxu0
    %vm354 = vcmask 261120
    %v356 = vsel %vm354, %v332, 0
    %v359 = vsel %vm354, %v335, 0
    %v362 = vsel %vm354, %v340, 0
    %v365 = vsel %vm354, %v343, 0
    %v368 = vsel %vm354, %v348, 0
    %v371 = vsel %vm354, %v351, 0
    %373 = vmatprep.subr.mxu0 0.0
    %374 = vmatpush1.msra.mxu0 0.0
    %375 = vmatprep.subr.mxu0 0.0
    %376 = vmatpush1.msra.mxu0 0.0
    %377 = vmatprep.subr.mxu0 0.0
    %378 = vmatpush1.msra.mxu0 0.0
    %379 = vmatprep.subr.mxu0 0.0
    %380 = vmatpush1.msra.mxu0 0.0
    %381 = vmatprep.subr.mxu0 0.0
    %382 = vmatpush1.msra.mxu0 0.0
    %383 = vmatprep.subr.mxu0 0.0
    %384 = vmatpush1.msra.mxu0 0.0
    %385 = vmatprep.subr.mxu0 0.0
    %386 = vmatpush1.msra.mxu0 0.0
    %387 = vmatprep.subr.mxu0 0.0
    %388 = vmatpush1.msra.mxu0 0.0
    %389 = vmatprep.subr.mxu0 0.0
    %390 = vmatpush1.msra.mxu0 0.0
    %391 = vmatprep.subr.mxu0 0.0
    %392 = vmatpush1.msra.mxu0 0.0
    %393 = vmatprep.subr.mxu0 0.0
    %394 = vmatpush1.msra.mxu0 0.0
    %395 = vmatprep.subr.mxu0 0.0
    %396 = vmatpush1.msra.mxu0 0.0
    %397 = vmatprep.subr.mxu0 0.0
    %398 = vmatpush1.msra.mxu0 %v146
    %399 = vmatprep.subr.mxu0 0.0
    %400 = vmatpush1.msra.mxu0 %v145
    %401 = vmatprep.subr.mxu0 0.0
    %402 = vmatpush1.msra.mxu0 %v144
    %403 = vmatprep.subr.mxu0 0.0
    %404 = vmatpush1.msra.mxu0 %v143
    %405 = vmatprep.subr.mxu0 0.0
    %406 = vmatpush2.msra.mxu0 0.0
    %407 = vmatprep.subr.mxu0 0.0
    %408 = vmatpush2.msra.mxu0 0.0
    %409 = vmatprep.subr.mxu0 0.0
    %410 = vmatpush2.msra.mxu0 0.0
    %411 = vmatprep.subr.mxu0 0.0
    %412 = vmatpush2.msra.mxu0 0.0
    %413 = vmatprep.subr.mxu0 0.0
    %414 = vmatpush2.msra.mxu0 0.0
    %415 = vmatprep.subr.mxu0 0.0
    %416 = vmatpush2.msra.mxu0 0.0
    %417 = vmatprep.subr.mxu0 0.0
    %418 = vmatpush2.msra.mxu0 0.0
    %419 = vmatprep.subr.mxu0 0.0
    %420 = vmatpush2.msra.mxu0 0.0
    %421 = vmatprep.subr.mxu0 0.0
    %422 = vmatpush2.msra.mxu0 0.0
    %423 = vmatprep.subr.mxu0 0.0
    %424 = vmatpush2.msra.mxu0 0.0
    %425 = vmatprep.subr.mxu0 0.0
    %426 = vmatpush2.msra.mxu0 0.0
    %427 = vmatprep.subr.mxu0 0.0
    %428 = vmatpush2.msra.mxu0 0.0
    %429 = vmatprep.subr.mxu0 0.0
    %430 = vmatpush2.msra.mxu0 0.0
    %431 = vmatprep.subr.mxu0 0.0
    %432 = vmatpush2.msra.mxu0 0.0
    %433 = vmatprep.subr.mxu0 0.0
    %434 = vmatpush2.msra.mxu0 0.0
    %435 = vmatprep.subr.mxu0 0.0
    %436 = vmatpush2.msra.mxu0 0.0
    %437 = vmatprep.mubr.f32.mxu0 0.0
    %438 = vmatmul.mubr.f32.gmra.mxu0 %v356
    %v439 = vpop.f32.mrf.mxu0
    %v440 = vadd.f32 0.0, %v439
    %v441 = vpop.f32.mrf.mxu0
    %442 = vmatprep.mubr.f32.mxu0 0.0
    %443 = vmatmul.mubr.f32.gmra.mxu0 %v359
    %v444 = vpop.f32.mrf.mxu0
    %v445 = vadd.f32 0.0, %v444
    %v446 = vpop.f32.mrf.mxu0
    %447 = vmatprep.mubr.f32.mxu0 0.0
    %448 = vmatmul.mubr.f32.gmra.mxu0 %v362
    %v449 = vpop.f32.mrf.mxu0
    %v450 = vadd.f32 0.0, %v449
    %v451 = vpop.f32.mrf.mxu0
    %452 = vmatprep.mubr.f32.mxu0 0.0
    %453 = vmatmul.mubr.f32.gmra.mxu0 %v365
    %v454 = vpop.f32.mrf.mxu0
    %v455 = vadd.f32 0.0, %v454
    %v456 = vpop.f32.mrf.mxu0
    %457 = vmatprep.mubr.f32.mxu0 0.0
    %458 = vmatmul.mubr.f32.gmra.mxu0 %v368
    %v459 = vpop.f32.mrf.mxu0
    %v460 = vadd.f32 0.0, %v459
    %v461 = vpop.f32.mrf.mxu0
    %462 = vmatprep.mubr.f32.mxu0 0.0
    %463 = vmatmul.mubr.f32.gmra.mxu0 %v371
    %v464 = vpop.f32.mrf.mxu0
    %v465 = vadd.f32 0.0, %v464
    %v466 = vpop.f32.mrf.mxu0
    %467 = vdwg.mxu0
    %v468 = vadd.f32 %v235, %v440
    %v469 = vadd.f32 %v240, %v445
    %v470 = vadd.f32 %v245, %v450
    %v471 = vadd.f32 %v250, %v455
    %v472 = vadd.f32 %v255, %v460
    %v473 = vadd.f32 %v260, %v465
    %v474 = vmax.f32 %v468, 0.0
    %v475 = vmax.f32 %v469, 0.0
    %v476 = vmax.f32 %v470, 0.0
    %v477 = vmax.f32 %v471, 0.0
    %v478 = vmax.f32 %v472, 0.0
    %v479 = vmax.f32 %v473, 0.0
    %v480 = vpack.c.bf16 %v475, %v474
    %v481 = vpack.c.bf16 %v477, %v476
    %v482 = vpack.c.bf16 %v479, %v478
    %483 = vmatprep.subr.bf16.mxu0 0
    %484 = vmatpush1.bf16.msra.mxu0 0
    %485 = vmatprep.subr.bf16.mxu0 0
    %486 = vmatpush1.bf16.msra.mxu0 0
    %487 = vmatprep.subr.bf16.mxu0 0
    %488 = vmatpush1.bf16.msra.mxu0 0
    %489 = vmatprep.subr.bf16.mxu0 0
    %490 = vmatpush1.bf16.msra.mxu0 0
    %491 = vmatprep.subr.bf16.mxu0 0
    %492 = vmatpush1.bf16.msra.mxu0 0
    %493 = vmatprep.subr.bf16.mxu0 0
    %494 = vmatpush1.bf16.msra.mxu0 %v482
    %495 = vmatprep.subr.bf16.mxu0 0
    %496 = vmatpush1.bf16.msra.mxu0 %v481
    %497 = vmatprep.subr.bf16.mxu0 0
    %498 = vmatpush1.bf16.msra.mxu0 %v480
    %499 = vmatprep.subr.bf16.mxu0 0
    %500 = vmatpush2.bf16.msra.mxu0 0
    %501 = vmatprep.subr.bf16.mxu0 0
    %502 = vmatpush2.bf16.msra.mxu0 0
    %503 = vmatprep.subr.bf16.mxu0 0
    %504 = vmatpush2.bf16.msra.mxu0 0
    %505 = vmatprep.subr.bf16.mxu0 0
    %506 = vmatpush2.bf16.msra.mxu0 0
    %507 = vmatprep.subr.bf16.mxu0 0
    %508 = vmatpush2.bf16.msra.mxu0 0
    %509 = vmatprep.subr.bf16.mxu0 0
    %510 = vmatpush2.bf16.msra.mxu0 0
    %511 = vmatprep.subr.bf16.mxu0 0
    %512 = vmatpush2.bf16.msra.mxu0 0
    %513 = vmatprep.subr.bf16.mxu0 0
    %514 = vmatpush2.bf16.msra.mxu0 0
    %515 = vmatprep.mubr.bf16.mxu0 0
    %516 = vmatmul.mubr.bf16.gmra.mxu0 %v289
    %v517 = vpop.f32.mrf.mxu0
    %v518 = vadd.f32 0.0, %v517
    %v519 = vpop.f32.mrf.mxu0
    %v520 = vpop.f32.mrf.mxu0
    %v521 = vadd.f32 0.0, %v520
    %v522 = vpop.f32.mrf.mxu0
    %523 = vmatprep.mubr.bf16.mxu0 0
    %524 = vmatmul.mubr.bf16.gmra.mxu0 %v292
    %v525 = vpop.f32.mrf.mxu0
    %v526 = vadd.f32 0.0, %v525
    %v527 = vpop.f32.mrf.mxu0
    %v528 = vpop.f32.mrf.mxu0
    %v529 = vadd.f32 0.0, %v528
    %v530 = vpop.f32.mrf.mxu0
    %531 = vmatprep.mubr.bf16.mxu0 0
    %532 = vmatmul.mubr.bf16.gmra.mxu0 %v295
    %v533 = vpop.f32.mrf.mxu0
    %v534 = vadd.f32 0.0, %v533
    %v535 = vpop.f32.mrf.mxu0
    %v536 = vpop.f32.mrf.mxu0
    %v537 = vadd.f32 0.0, %v536
    %v538 = vpop.f32.mrf.mxu0
    %539 = vdwg.mxu0
    %v541 = vsel %vm354, %v518, 0
    %v544 = vsel %vm354, %v521, 0
    %v547 = vsel %vm354, %v526, 0
    %v550 = vsel %vm354, %v529, 0
    %v553 = vsel %vm354, %v534, 0
    %v556 = vsel %vm354, %v537, 0
    %558 = vmatprep.subr.mxu0 0.0
    %559 = vmatpush1.msra.mxu0 0.0
    %560 = vmatprep.subr.mxu0 0.0
    %561 = vmatpush1.msra.mxu0 0.0
    %562 = vmatprep.subr.mxu0 0.0
    %563 = vmatpush1.msra.mxu0 0.0
    %564 = vmatprep.subr.mxu0 0.0
    %565 = vmatpush1.msra.mxu0 0.0
    %566 = vmatprep.subr.mxu0 0.0
    %567 = vmatpush1.msra.mxu0 0.0
    %568 = vmatprep.subr.mxu0 0.0
    %569 = vmatpush1.msra.mxu0 0.0
    %570 = vmatprep.subr.mxu0 0.0
    %571 = vmatpush1.msra.mxu0 0.0
    %572 = vmatprep.subr.mxu0 0.0
    %573 = vmatpush1.msra.mxu0 0.0
    %574 = vmatprep.subr.mxu0 0.0
    %575 = vmatpush1.msra.mxu0 0.0
    %576 = vmatprep.subr.mxu0 0.0
    %577 = vmatpush1.msra.mxu0 0.0
    %578 = vmatprep.subr.mxu0 0.0
    %579 = vmatpush1.msra.mxu0 0.0
    %580 = vmatprep.subr.mxu0 0.0
    %581 = vmatpush1.msra.mxu0 0.0
    %582 = vmatprep.subr.mxu0 0.0
    %583 = vmatpush1.msra.mxu0 %v146
    %584 = vmatprep.subr.mxu0 0.0
    %585 = vmatpush1.msra.mxu0 %v145
    %586 = vmatprep.subr.mxu0 0.0
    %587 = vmatpush1.msra.mxu0 %v144
    %588 = vmatprep.subr.mxu0 0.0
    %589 = vmatpush1.msra.mxu0 %v143
    %590 = vmatprep.subr.mxu0 0.0
    %591 = vmatpush2.msra.mxu0 0.0
    %592 = vmatprep.subr.mxu0 0.0
    %593 = vmatpush2.msra.mxu0 0.0
    %594 = vmatprep.subr.mxu0 0.0
    %595 = vmatpush2.msra.mxu0 0.0
    %596 = vmatprep.subr.mxu0 0.0
    %597 = vmatpush2.msra.mxu0 0.0
    %598 = vmatprep.subr.mxu0 0.0
    %599 = vmatpush2.msra.mxu0 0.0
    %600 = vmatprep.subr.mxu0 0.0
    %601 = vmatpush2.msra.mxu0 0.0
    %602 = vmatprep.subr.mxu0 0.0
    %603 = vmatpush2.msra.mxu0 0.0
    %604 = vmatprep.subr.mxu0 0.0
    %605 = vmatpush2.msra.mxu0 0.0
    %606 = vmatprep.subr.mxu0 0.0
    %607 = vmatpush2.msra.mxu0 0.0
    %608 = vmatprep.subr.mxu0 0.0
    %609 = vmatpush2.msra.mxu0 0.0
    %610 = vmatprep.subr.mxu0 0.0
    %611 = vmatpush2.msra.mxu0 0.0
    %612 = vmatprep.subr.mxu0 0.0
    %613 = vmatpush2.msra.mxu0 0.0
    %614 = vmatprep.subr.mxu0 0.0
    %615 = vmatpush2.msra.mxu0 0.0
    %616 = vmatprep.subr.mxu0 0.0
    %617 = vmatpush2.msra.mxu0 0.0
    %618 = vmatprep.subr.mxu0 0.0
    %619 = vmatpush2.msra.mxu0 0.0
    %620 = vmatprep.subr.mxu0 0.0
    %621 = vmatpush2.msra.mxu0 0.0
    %622 = vmatprep.mubr.f32.mxu0 0.0
    %623 = vmatmul.mubr.f32.gmra.mxu0 %v541
    %v624 = vpop.f32.mrf.mxu0
    %v625 = vadd.f32 0.0, %v624
    %v626 = vpop.f32.mrf.mxu0
    %627 = vmatprep.mubr.f32.mxu0 0.0
    %628 = vmatmul.mubr.f32.gmra.mxu0 %v544
    %v629 = vpop.f32.mrf.mxu0
    %v630 = vadd.f32 0.0, %v629
    %v631 = vpop.f32.mrf.mxu0
    %632 = vmatprep.mubr.f32.mxu0 0.0
    %633 = vmatmul.mubr.f32.gmra.mxu0 %v547
    %v634 = vpop.f32.mrf.mxu0
    %v635 = vadd.f32 0.0, %v634
    %v636 = vpop.f32.mrf.mxu0
    %637 = vmatprep.mubr.f32.mxu0 0.0
    %638 = vmatmul.mubr.f32.gmra.mxu0 %v550
    %v639 = vpop.f32.mrf.mxu0
    %v640 = vadd.f32 0.0, %v639
    %v641 = vpop.f32.mrf.mxu0
    %642 = vmatprep.mubr.f32.mxu0 0.0
    %643 = vmatmul.mubr.f32.gmra.mxu0 %v553
    %v644 = vpop.f32.mrf.mxu0
    %v645 = vadd.f32 0.0, %v644
    %v646 = vpop.f32.mrf.mxu0
    %647 = vmatprep.mubr.f32.mxu0 0.0
    %648 = vmatmul.mubr.f32.gmra.mxu0 %v556
    %v649 = vpop.f32.mrf.mxu0
    %v650 = vadd.f32 0.0, %v649
    %v651 = vpop.f32.mrf.mxu0
    %652 = vdwg.mxu0
    %v653 = vadd.f32 %v235, %v625
    %v654 = vadd.f32 %v240, %v630
    %v655 = vadd.f32 %v245, %v635
    %v656 = vadd.f32 %v250, %v640
    %v657 = vadd.f32 %v255, %v645
    %v658 = vadd.f32 %v260, %v650
    %v659 = vmax.f32 %v653, 0.0
    %v660 = vmax.f32 %v654, 0.0
    %v661 = vmax.f32 %v655, 0.0
    %v662 = vmax.f32 %v656, 0.0
    %v663 = vmax.f32 %v657, 0.0
    %v664 = vmax.f32 %v658, 0.0
    %v665 = vpack.c.bf16 %v660, %v659
    %v666 = vpack.c.bf16 %v662, %v661
    %v667 = vpack.c.bf16 %v664, %v663
    %v671 = vunpack.c.l.b16 %v140
    %v672 = vunpack.c.l.b16 %v141
    %v673 = vunpack.c.l.b16 %v142
    %v674 = vpack.c.b16 %v672, %v671
    %v675 = vpack.c.b16 %v673, %v673
    %v677 = vsel %vm287, %v674, 0
    %v680 = vsel %vm287, %v675, 0
    %682 = vmatprep.subr.bf16.mxu0 0
    %683 = vmatpush1.bf16.msra.mxu0 0
    %684 = vmatprep.subr.bf16.mxu0 0
    %685 = vmatpush1.bf16.msra.mxu0 0
    %686 = vmatprep.subr.bf16.mxu0 0
    %687 = vmatpush1.bf16.msra.mxu0 0
    %688 = vmatprep.subr.bf16.mxu0 0
    %689 = vmatpush1.bf16.msra.mxu0 0
    %690 = vmatprep.subr.bf16.mxu0 0
    %691 = vmatpush1.bf16.msra.mxu0 0
    %692 = vmatprep.subr.bf16.mxu0 0
    %693 = vmatpush1.bf16.msra.mxu0 %v667
    %694 = vmatprep.subr.bf16.mxu0 0
    %695 = vmatpush1.bf16.msra.mxu0 %v666
    %696 = vmatprep.subr.bf16.mxu0 0
    %697 = vmatpush1.bf16.msra.mxu0 %v665
    %698 = vmatprep.subr.bf16.mxu0 0
    %699 = vmatpush2.bf16.msra.mxu0 0
    %700 = vmatprep.subr.bf16.mxu0 0
    %701 = vmatpush2.bf16.msra.mxu0 0
    %702 = vmatprep.subr.bf16.mxu0 0
    %703 = vmatpush2.bf16.msra.mxu0 0
    %704 = vmatprep.subr.bf16.mxu0 0
    %705 = vmatpush2.bf16.msra.mxu0 0
    %706 = vmatprep.subr.bf16.mxu0 0
    %707 = vmatpush2.bf16.msra.mxu0 0
    %708 = vmatprep.subr.bf16.mxu0 0
    %709 = vmatpush2.bf16.msra.mxu0 0
    %710 = vmatprep.subr.bf16.mxu0 0
    %711 = vmatpush2.bf16.msra.mxu0 0
    %712 = vmatprep.subr.bf16.mxu0 0
    %713 = vmatpush2.bf16.msra.mxu0 0
    %714 = vmatprep.mubr.bf16.mxu0 0
    %715 = vmatmul.mubr.bf16.gmra.mxu0 %v677
    %v716 = vpop.f32.mrf.mxu0
    %v717 = vadd.f32 0.0, %v716
    %v718 = vpop.f32.mrf.mxu0
    %v719 = vpop.f32.mrf.mxu0
    %v720 = vadd.f32 0.0, %v719
    %v721 = vpop.f32.mrf.mxu0
    %722 = vmatprep.mubr.bf16.mxu0 0
    %723 = vmatmul.mubr.bf16.gmra.mxu0 %v680
    %v724 = vpop.f32.mrf.mxu0
    %v725 = vadd.f32 0.0, %v724
    %v726 = vpop.f32.mrf.mxu0
    %v727 = vpop.f32.mrf.mxu0
    %v728 = vpop.f32.mrf.mxu0
    %729 = vdwg.mxu0
    %v730 = vld [vmem:[#allocation8] sm:$0xff]
    %v731 = vld [vmem:[#allocation8 + $0x8] sm:$0xff]
    %v732 = vld [vmem:[%s8] sm:$0xff]
    %v733 = vld [vmem:[%s8 + $0x8] sm:$0xff]
    %v734 = vld [vmem:[%s8 + $0x10] sm:$0xff]
    %v735 = vld [vmem:[%s8 + $0x18] sm:$0xff]
    %v737 = vsel %vm354, %v717, 0
    %v740 = vsel %vm354, %v720, 0
    %v743 = vsel %vm354, %v725, 0
    %745 = vmatprep.subr.mxu0 0.0
    %746 = vmatpush1.msra.mxu0 0.0
    %747 = vmatprep.subr.mxu0 0.0
    %748 = vmatpush1.msra.mxu0 0.0
    %749 = vmatprep.subr.mxu0 0.0
    %750 = vmatpush1.msra.mxu0 0.0
    %751 = vmatprep.subr.mxu0 0.0
    %752 = vmatpush1.msra.mxu0 0.0
    %753 = vmatprep.subr.mxu0 0.0
    %754 = vmatpush1.msra.mxu0 0.0
    %755 = vmatprep.subr.mxu0 0.0
    %756 = vmatpush1.msra.mxu0 0.0
    %757 = vmatprep.subr.mxu0 0.0
    %758 = vmatpush1.msra.mxu0 0.0
    %759 = vmatprep.subr.mxu0 0.0
    %760 = vmatpush1.msra.mxu0 0.0
    %761 = vmatprep.subr.mxu0 0.0
    %762 = vmatpush1.msra.mxu0 0.0
    %763 = vmatprep.subr.mxu0 0.0
    %764 = vmatpush1.msra.mxu0 0.0
    %765 = vmatprep.subr.mxu0 0.0
    %766 = vmatpush1.msra.mxu0 0.0
    %767 = vmatprep.subr.mxu0 0.0
    %768 = vmatpush1.msra.mxu0 0.0
    %769 = vmatprep.subr.mxu0 0.0
    %770 = vmatpush1.msra.mxu0 %v735
    %771 = vmatprep.subr.mxu0 0.0
    %772 = vmatpush1.msra.mxu0 %v734
    %773 = vmatprep.subr.mxu0 0.0
    %774 = vmatpush1.msra.mxu0 %v733
    %775 = vmatprep.subr.mxu0 0.0
    %776 = vmatpush1.msra.mxu0 %v732
    %777 = vmatprep.subr.mxu0 0.0
    %778 = vmatpush2.msra.mxu0 0.0
    %779 = vmatprep.subr.mxu0 0.0
    %780 = vmatpush2.msra.mxu0 0.0
    %781 = vmatprep.subr.mxu0 0.0
    %782 = vmatpush2.msra.mxu0 0.0
    %783 = vmatprep.subr.mxu0 0.0
    %784 = vmatpush2.msra.mxu0 0.0
    %785 = vmatprep.subr.mxu0 0.0
    %786 = vmatpush2.msra.mxu0 0.0
    %787 = vmatprep.subr.mxu0 0.0
    %788 = vmatpush2.msra.mxu0 0.0
    %789 = vmatprep.subr.mxu0 0.0
    %790 = vmatpush2.msra.mxu0 0.0
    %791 = vmatprep.subr.mxu0 0.0
    %792 = vmatpush2.msra.mxu0 0.0
    %793 = vmatprep.subr.mxu0 0.0
    %794 = vmatpush2.msra.mxu0 0.0
    %795 = vmatprep.subr.mxu0 0.0
    %796 = vmatpush2.msra.mxu0 0.0
    %797 = vmatprep.subr.mxu0 0.0
    %798 = vmatpush2.msra.mxu0 0.0
    %799 = vmatprep.subr.mxu0 0.0
    %800 = vmatpush2.msra.mxu0 0.0
    %801 = vmatprep.subr.mxu0 0.0
    %802 = vmatpush2.msra.mxu0 0.0
    %803 = vmatprep.subr.mxu0 0.0
    %804 = vmatpush2.msra.mxu0 0.0
    %805 = vmatprep.subr.mxu0 0.0
    %806 = vmatpush2.msra.mxu0 0.0
    %807 = vmatprep.subr.mxu0 0.0
    %808 = vmatpush2.msra.mxu0 0.0
    %809 = vmatprep.mubr.f32.mxu0 0.0
    %810 = vmatmul.mubr.f32.gmra.mxu0 %v737
    %v811 = vpop.f32.mrf.mxu0
    %v812 = vadd.f32 0.0, %v811
    %v813 = vpop.f32.mrf.mxu0
    %814 = vmatprep.mubr.f32.mxu0 0.0
    %815 = vmatmul.mubr.f32.gmra.mxu0 %v740
    %v816 = vpop.f32.mrf.mxu0
    %v817 = vadd.f32 0.0, %v816
    %v818 = vpop.f32.mrf.mxu0
    %819 = vmatprep.mubr.f32.mxu0 0.0
    %820 = vmatmul.mubr.f32.gmra.mxu0 %v743
    %v821 = vpop.f32.mrf.mxu0
    %v822 = vadd.f32 0.0, %v821
    %v823 = vpop.f32.mrf.mxu0
    %824 = vdwg.mxu0
    %v826 = vsel %vm149, %v125, 0
    %v829 = vsel %vm149, %v126, 0
    %v832 = vsel %vm149, %v127, 0
    %834 = vmatprep.subr.mxu0 0.0
    %835 = vmatpush1.msra.mxu0 0.0
    %836 = vmatprep.subr.mxu0 0.0
    %837 = vmatpush1.msra.mxu0 0.0
    %838 = vmatprep.subr.mxu0 0.0
    %839 = vmatpush1.msra.mxu0 0.0
    %840 = vmatprep.subr.mxu0 0.0
    %841 = vmatpush1.msra.mxu0 0.0
    %842 = vmatprep.subr.mxu0 0.0
    %843 = vmatpush1.msra.mxu0 0.0
    %844 = vmatprep.subr.mxu0 0.0
    %845 = vmatpush1.msra.mxu0 0.0
    %846 = vmatprep.subr.mxu0 0.0
    %847 = vmatpush1.msra.mxu0 0.0
    %848 = vmatprep.subr.mxu0 0.0
    %849 = vmatpush1.msra.mxu0 0.0
    %850 = vmatprep.subr.mxu0 0.0
    %851 = vmatpush1.msra.mxu0 0.0
    %852 = vmatprep.subr.mxu0 0.0
    %853 = vmatpush1.msra.mxu0 0.0
    %854 = vmatprep.subr.mxu0 0.0
    %855 = vmatpush1.msra.mxu0 0.0
    %856 = vmatprep.subr.mxu0 0.0
    %857 = vmatpush1.msra.mxu0 0.0
    %858 = vmatprep.subr.mxu0 0.0
    %859 = vmatpush1.msra.mxu0 0.0
    %860 = vmatprep.subr.mxu0 0.0
    %861 = vmatpush1.msra.mxu0 0.0
    %862 = vmatprep.subr.mxu0 0.0
    %863 = vmatpush1.msra.mxu0 %v731
    %864 = vmatprep.subr.mxu0 0.0
    %865 = vmatpush1.msra.mxu0 %v730
    %866 = vmatprep.subr.mxu0 0.0
    %867 = vmatpush2.msra.mxu0 0.0
    %868 = vmatprep.subr.mxu0 0.0
    %869 = vmatpush2.msra.mxu0 0.0
    %870 = vmatprep.subr.mxu0 0.0
    %871 = vmatpush2.msra.mxu0 0.0
    %872 = vmatprep.subr.mxu0 0.0
    %873 = vmatpush2.msra.mxu0 0.0
    %874 = vmatprep.subr.mxu0 0.0
    %875 = vmatpush2.msra.mxu0 0.0
    %876 = vmatprep.subr.mxu0 0.0
    %877 = vmatpush2.msra.mxu0 0.0
    %878 = vmatprep.subr.mxu0 0.0
    %879 = vmatpush2.msra.mxu0 0.0
    %880 = vmatprep.subr.mxu0 0.0
    %881 = vmatpush2.msra.mxu0 0.0
    %882 = vmatprep.subr.mxu0 0.0
    %883 = vmatpush2.msra.mxu0 0.0
    %884 = vmatprep.subr.mxu0 0.0
    %885 = vmatpush2.msra.mxu0 0.0
    %886 = vmatprep.subr.mxu0 0.0
    %887 = vmatpush2.msra.mxu0 0.0
    %888 = vmatprep.subr.mxu0 0.0
    %889 = vmatpush2.msra.mxu0 0.0
    %890 = vmatprep.subr.mxu0 0.0
    %891 = vmatpush2.msra.mxu0 0.0
    %892 = vmatprep.subr.mxu0 0.0
    %893 = vmatpush2.msra.mxu0 0.0
    %894 = vmatprep.subr.mxu0 0.0
    %895 = vmatpush2.msra.mxu0 0.0
    %896 = vmatprep.subr.mxu0 0.0
    %897 = vmatpush2.msra.mxu0 0.0
    %898 = vmatprep.mubr.f32.mxu0 0.0
    %899 = vmatmul.mubr.f32.gmra.mxu0 %v826
    %v900 = vpop.f32.mrf.mxu0
    %v901 = vadd.f32 %v812, %v900
    %v902 = vpop.f32.mrf.mxu0
    %903 = vmatprep.mubr.f32.mxu0 0.0
    %904 = vmatmul.mubr.f32.gmra.mxu0 %v829
    %v905 = vpop.f32.mrf.mxu0
    %v906 = vadd.f32 %v817, %v905
    %v907 = vpop.f32.mrf.mxu0
    %908 = vmatprep.mubr.f32.mxu0 0.0
    %909 = vmatmul.mubr.f32.gmra.mxu0 %v832
    %v910 = vpop.f32.mrf.mxu0
    %v911 = vadd.f32 %v822, %v910
    %v912 = vpop.f32.mrf.mxu0
    %913 = vdwg.mxu0
    %v914 = vld [vmem:[#allocation10] sm:$0x1]
    %v916 = vlaneseq
    %v917 = vshrl.u32 %v916, 7
    %v918 = vsub.s32 0, %v917
    %v919 = vrot.slane %v914, %v918
    %v921 = vadd.f32 %v901, %v919
    %v922 = vadd.f32 %v906, %v919
    %v923 = vadd.f32 %v911, %v919
    %v924 = vmax.f32 %v921, 0.0
    %v925 = vmax.f32 %v922, 0.0
    %v926 = vmax.f32 %v923, 0.0
    %v927 = vld [vmem:[#allocation7] sm:$0xff]
    %vm928 = vcmask 195584
    %v930 = vsel %vm928, %v927, 0
    %932 = vmatprep.subr.mxu0 0.0
    %933 = vmatpush1.msra.mxu0 0.0
    %934 = vmatprep.subr.mxu0 0.0
    %935 = vmatpush1.msra.mxu0 0.0
    %936 = vmatprep.subr.mxu0 0.0
    %937 = vmatpush1.msra.mxu0 0.0
    %938 = vmatprep.subr.mxu0 0.0
    %939 = vmatpush1.msra.mxu0 0.0
    %940 = vmatprep.subr.mxu0 0.0
    %941 = vmatpush1.msra.mxu0 0.0
    %942 = vmatprep.subr.mxu0 0.0
    %943 = vmatpush1.msra.mxu0 0.0
    %944 = vmatprep.subr.mxu0 0.0
    %945 = vmatpush1.msra.mxu0 0.0
    %946 = vmatprep.subr.mxu0 0.0
    %947 = vmatpush1.msra.mxu0 0.0
    %948 = vmatprep.subr.mxu0 0.0
    %949 = vmatpush1.msra.mxu0 0.0
    %950 = vmatprep.subr.mxu0 0.0
    %951 = vmatpush1.msra.mxu0 0.0
    %952 = vmatprep.subr.mxu0 0.0
    %953 = vmatpush1.msra.mxu0 0.0
    %954 = vmatprep.subr.mxu0 0.0
    %955 = vmatpush1.msra.mxu0 0.0
    %956 = vmatprep.subr.mxu0 0.0
    %957 = vmatpush1.msra.mxu0 0.0
    %958 = vmatprep.subr.mxu0 0.0
    %959 = vmatpush1.msra.mxu0 %v926
    %960 = vmatprep.subr.mxu0 0.0
    %961 = vmatpush1.msra.mxu0 %v925
    %962 = vmatprep.subr.mxu0 0.0
    %963 = vmatpush1.msra.mxu0 %v924
    %964 = vmatprep.subr.mxu0 0.0
    %965 = vmatpush2.msra.mxu0 0.0
    %966 = vmatprep.subr.mxu0 0.0
    %967 = vmatpush2.msra.mxu0 0.0
    %968 = vmatprep.subr.mxu0 0.0
    %969 = vmatpush2.msra.mxu0 0.0
    %970 = vmatprep.subr.mxu0 0.0
    %971 = vmatpush2.msra.mxu0 0.0
    %972 = vmatprep.subr.mxu0 0.0
    %973 = vmatpush2.msra.mxu0 0.0
    %974 = vmatprep.subr.mxu0 0.0
    %975 = vmatpush2.msra.mxu0 0.0
    %976 = vmatprep.subr.mxu0 0.0
    %977 = vmatpush2.msra.mxu0 0.0
    %978 = vmatprep.subr.mxu0 0.0
    %979 = vmatpush2.msra.mxu0 0.0
    %980 = vmatprep.subr.mxu0 0.0
    %981 = vmatpush2.msra.mxu0 0.0
    %982 = vmatprep.subr.mxu0 0.0
    %983 = vmatpush2.msra.mxu0 0.0
    %984 = vmatprep.subr.mxu0 0.0
    %985 = vmatpush2.msra.mxu0 0.0
    %986 = vmatprep.subr.mxu0 0.0
    %987 = vmatpush2.msra.mxu0 0.0
    %988 = vmatprep.subr.mxu0 0.0
    %989 = vmatpush2.msra.mxu0 0.0
    %990 = vmatprep.subr.mxu0 0.0
    %991 = vmatpush2.msra.mxu0 0.0
    %992 = vmatprep.subr.mxu0 0.0
    %993 = vmatpush2.msra.mxu0 0.0
    %994 = vmatprep.subr.mxu0 0.0
    %995 = vmatpush2.msra.mxu0 0.0
    %996 = vmatprep.mubr.f32.mxu0 0.0
    %997 = vmatmul.mubr.f32.gmra.mxu0 %v930
    %v998 = vpop.f32.mrf.mxu0
    %v999 = vadd.f32 0.0, %v998
    %v1000 = vpop.f32.mrf.mxu0
    %1001 = vdwg.mxu0
    %v1002 = vld [vmem:[%s11] sm:$0xff]
    %v1003 = vld [vmem:[%s11 + $0x8] sm:$0xff]
    %v1004 = vld [vmem:[%s11 + $0x10] sm:$0xff]
    %v1005 = vld [vmem:[%s11 + $0x18] sm:$0xff]
    %v1006 = vld [vmem:[%s10] sm:$0xff]
    %v1007 = vld [vmem:[#allocation11] sm:$0xff]
    %vm1008 = vcmask 64512
    %v1010 = vsel %vm1008, %v1006, 0
    %1012 = vmatprep.subr.mxu0 0.0
    %1013 = vmatpush1.msra.mxu0 0.0
    %1014 = vmatprep.subr.mxu0 0.0
    %1015 = vmatpush1.msra.mxu0 0.0
    %1016 = vmatprep.subr.mxu0 0.0
    %1017 = vmatpush1.msra.mxu0 0.0
    %1018 = vmatprep.subr.mxu0 0.0
    %1019 = vmatpush1.msra.mxu0 0.0
    %1020 = vmatprep.subr.mxu0 0.0
    %1021 = vmatpush1.msra.mxu0 0.0
    %1022 = vmatprep.subr.mxu0 0.0
    %1023 = vmatpush1.msra.mxu0 0.0
    %1024 = vmatprep.subr.mxu0 0.0
    %1025 = vmatpush1.msra.mxu0 0.0
    %1026 = vmatprep.subr.mxu0 0.0
    %1027 = vmatpush1.msra.mxu0 0.0
    %1028 = vmatprep.subr.mxu0 0.0
    %1029 = vmatpush1.msra.mxu0 0.0
    %1030 = vmatprep.subr.mxu0 0.0
    %1031 = vmatpush1.msra.mxu0 0.0
    %1032 = vmatprep.subr.mxu0 0.0
    %1033 = vmatpush1.msra.mxu0 0.0
    %1034 = vmatprep.subr.mxu0 0.0
    %1035 = vmatpush1.msra.mxu0 0.0
    %1036 = vmatprep.subr.mxu0 0.0
    %1037 = vmatpush1.msra.mxu0 0.0
    %1038 = vmatprep.subr.mxu0 0.0
    %1039 = vmatpush1.msra.mxu0 0.0
    %1040 = vmatprep.subr.mxu0 0.0
    %1041 = vmatpush1.msra.mxu0 0.0
    %1042 = vmatprep.subr.mxu0 0.0
    %1043 = vmatpush1.msra.mxu0 %v1007
    %1044 = vmatprep.subr.mxu0 0.0
    %1045 = vmatpush2.msra.mxu0 0.0
    %1046 = vmatprep.subr.mxu0 0.0
    %1047 = vmatpush2.msra.mxu0 0.0
    %1048 = vmatprep.subr.mxu0 0.0
    %1049 = vmatpush2.msra.mxu0 0.0
    %1050 = vmatprep.subr.mxu0 0.0
    %1051 = vmatpush2.msra.mxu0 0.0
    %1052 = vmatprep.subr.mxu0 0.0
    %1053 = vmatpush2.msra.mxu0 0.0
    %1054 = vmatprep.subr.mxu0 0.0
    %1055 = vmatpush2.msra.mxu0 0.0
    %1056 = vmatprep.subr.mxu0 0.0
    %1057 = vmatpush2.msra.mxu0 0.0
    %1058 = vmatprep.subr.mxu0 0.0
    %1059 = vmatpush2.msra.mxu0 0.0
    %1060 = vmatprep.subr.mxu0 0.0
    %1061 = vmatpush2.msra.mxu0 0.0
    %1062 = vmatprep.subr.mxu0 0.0
    %1063 = vmatpush2.msra.mxu0 0.0
    %1064 = vmatprep.subr.mxu0 0.0
    %1065 = vmatpush2.msra.mxu0 0.0
    %1066 = vmatprep.subr.mxu0 0.0
    %1067 = vmatpush2.msra.mxu0 0.0
    %1068 = vmatprep.subr.mxu0 0.0
    %1069 = vmatpush2.msra.mxu0 0.0
    %1070 = vmatprep.subr.mxu0 0.0
    %1071 = vmatpush2.msra.mxu0 0.0
    %1072 = vmatprep.subr.mxu0 0.0
    %1073 = vmatpush2.msra.mxu0 0.0
    %1074 = vmatprep.subr.mxu0 0.0
    %1075 = vmatpush2.msra.mxu0 0.0
    %1076 = vmatprep.mubr.f32.mxu0 0.0
    %1077 = vmatmul.mubr.f32.gmra.mxu0 %v1010
    %v1078 = vpop.f32.mrf.mxu0
    %v1079 = vadd.f32 0.0, %v1078
    %v1080 = vpop.f32.mrf.mxu0
    %1081 = vdwg.mxu0
    %v1083 = vsel %vm354, %v999, 0
    %1085 = vmatprep.subr.mxu0 0.0
    %1086 = vmatpush1.msra.mxu0 0.0
    %1087 = vmatprep.subr.mxu0 0.0
    %1088 = vmatpush1.msra.mxu0 0.0
    %1089 = vmatprep.subr.mxu0 0.0
    %1090 = vmatpush1.msra.mxu0 0.0
    %1091 = vmatprep.subr.mxu0 0.0
    %1092 = vmatpush1.msra.mxu0 0.0
    %1093 = vmatprep.subr.mxu0 0.0
    %1094 = vmatpush1.msra.mxu0 0.0
    %1095 = vmatprep.subr.mxu0 0.0
    %1096 = vmatpush1.msra.mxu0 0.0
    %1097 = vmatprep.subr.mxu0 0.0
    %1098 = vmatpush1.msra.mxu0 0.0
    %1099 = vmatprep.subr.mxu0 0.0
    %1100 = vmatpush1.msra.mxu0 0.0
    %1101 = vmatprep.subr.mxu0 0.0
    %1102 = vmatpush1.msra.mxu0 0.0
    %1103 = vmatprep.subr.mxu0 0.0
    %1104 = vmatpush1.msra.mxu0 0.0
    %1105 = vmatprep.subr.mxu0 0.0
    %1106 = vmatpush1.msra.mxu0 0.0
    %1107 = vmatprep.subr.mxu0 0.0
    %1108 = vmatpush1.msra.mxu0 0.0
    %1109 = vmatprep.subr.mxu0 0.0
    %1110 = vmatpush1.msra.mxu0 %v1005
    %1111 = vmatprep.subr.mxu0 0.0
    %1112 = vmatpush1.msra.mxu0 %v1004
    %1113 = vmatprep.subr.mxu0 0.0
    %1114 = vmatpush1.msra.mxu0 %v1003
    %1115 = vmatprep.subr.mxu0 0.0
    %1116 = vmatpush1.msra.mxu0 %v1002
    %1117 = vmatprep.subr.mxu0 0.0
    %1118 = vmatpush2.msra.mxu0 0.0
    %1119 = vmatprep.subr.mxu0 0.0
    %1120 = vmatpush2.msra.mxu0 0.0
    %1121 = vmatprep.subr.mxu0 0.0
    %1122 = vmatpush2.msra.mxu0 0.0
    %1123 = vmatprep.subr.mxu0 0.0
    %1124 = vmatpush2.msra.mxu0 0.0
    %1125 = vmatprep.subr.mxu0 0.0
    %1126 = vmatpush2.msra.mxu0 0.0
    %1127 = vmatprep.subr.mxu0 0.0
    %1128 = vmatpush2.msra.mxu0 0.0
    %1129 = vmatprep.subr.mxu0 0.0
    %1130 = vmatpush2.msra.mxu0 0.0
    %1131 = vmatprep.subr.mxu0 0.0
    %1132 = vmatpush2.msra.mxu0 0.0
    %1133 = vmatprep.subr.mxu0 0.0
    %1134 = vmatpush2.msra.mxu0 0.0
    %1135 = vmatprep.subr.mxu0 0.0
    %1136 = vmatpush2.msra.mxu0 0.0
    %1137 = vmatprep.subr.mxu0 0.0
    %1138 = vmatpush2.msra.mxu0 0.0
    %1139 = vmatprep.subr.mxu0 0.0
    %1140 = vmatpush2.msra.mxu0 0.0
    %1141 = vmatprep.subr.mxu0 0.0
    %1142 = vmatpush2.msra.mxu0 0.0
    %1143 = vmatprep.subr.mxu0 0.0
    %1144 = vmatpush2.msra.mxu0 0.0
    %1145 = vmatprep.subr.mxu0 0.0
    %1146 = vmatpush2.msra.mxu0 0.0
    %1147 = vmatprep.subr.mxu0 0.0
    %1148 = vmatpush2.msra.mxu0 0.0
    %1149 = vmatprep.mubr.f32.mxu0 0.0
    %1150 = vmatmul.mubr.f32.gmra.mxu0 %v1083
    %v1151 = vpop.f32.mrf.mxu0
    %v1152 = vadd.f32 %v1079, %v1151
    %v1153 = vpop.f32.mrf.mxu0
    %1154 = vdwg.mxu0
    %v1155 = vld [vmem:[%s13] sm:$0x1]
    %v1157 = vlaneseq
    %v1158 = vshrl.u32 %v1157, 7
    %v1159 = vsub.s32 0, %v1158
    %v1160 = vrot.slane %v1155, %v1159
    %v1162 = vadd.f32 %v1152, %v1160
    %v1163 = vxor.u32 %v1162, 2147483648
    %v1164 = vmul.f32 %v1163, 1.442695
    %v1165 = vpow.pop %v1164
    %v1166 = vadd.f32 %v1165, 1.0
    %v1167 = vrcp.pop %v1166
    %v1168 = vmul.f32 1.0, %v1167
    %1169 = vst [vmem:[#allocation13] sm:$0xff] %v1168
    // Predicated region
    $region82: #{tpu_custom_call.1} parent=1 // pred_check
      _
    $region83: #{tpu_custom_call.1} parent=1 // pred_check_branch
      %1171 = sbr.rel (0) target = $region85
    $region84: #{tpu_custom_call.1} parent=1 // pred_region
      %s1173 = ssub.s32 128, 128
      %1174 = vsyncadd [#allocation4], %s1173
      %s1176 = sshll.u32 [#allocation13], 4
      %s1177 = int_to_ptr.vmem [resolvable:$true] %s1176
      %1179 = dma.vmem_to_hbm [thread:$0]  %s1177, 128, %s14, [#allocation4]
    $region85: #{tpu_custom_call.1} parent=1 // pred_fallthru
      _
    // Predicated region
    $region86: #{tpu_custom_call.1} parent=1 // pred_check
      _
    $region87: #{tpu_custom_call.1} parent=1 // pred_check_branch
      %1181 = sbr.rel (0) target = $region89
    $region88: #{tpu_custom_call.1} parent=1 // pred_region
      %1182 = dma.done [#allocation4], 128
    $region89: #{tpu_custom_call.1} parent=1 // pred_fallthru
      _
    %1183 = vsyncpa [#allocation3], 1
    %1184 = vsyncpa [#allocation6], 1
    %1185 = vsyncpa [#allocation9], 1
    %1186 = vsyncpa [#allocation12], 1
    %1187 = vsyncpa [#allocation4], 1

</llo_original>
